<compile_context>
chip_gen: v7x
topology: tpu7x:2x2x1
jax: 0.10.0
libtpu: 0.0.40
codegen_flags: <defaults>
</compile_context>

<pallas_src>
import functools

import jax
import jax.numpy as jnp
from jax.experimental import pallas as pl
from jax.experimental.pallas import tpu as pltpu


_MASK_VALUE = -9000000000000000.0  # same constant as the PyTorch reference


def _round_up(x, m):
    return ((x + m - 1) // m) * m


@functools.lru_cache(maxsize=None)
def _vmem_capacity_bytes():
    """Physical VMEM per TensorCore (generation-aware), with a safe fallback."""
    cap = 64 * 1024 * 1024  # conservative default (v7x per-TC VMEM)
    try:
        info = pltpu.get_tpu_info()
        got = int(getattr(info, "vmem_capacity_bytes", 0) or 0)
        if got > 0:
            cap = got
    except Exception:
        pass
    return max(min(cap, 128 * 1024 * 1024), 32 * 1024 * 1024)


@functools.lru_cache(maxsize=None)
def _has_bf16_eup():
    """bf16 EUP (exp) path exists on v6e / v7x, not on v5e and older."""
    try:
        kind = jax.devices()[0].device_kind.lower()
    except Exception:
        return False
    return any(t in kind for t in ("v6", "v7", "tpu7"))


def _row_tile(n_rows, *, bytes_per_row_2buf, bytes_per_row_1buf=0,
              resident_bytes=0, budget=0, max_rows=512, align=32):
    """Largest row tile (multiple of `align`) fitting the VMEM budget.

    Streamed tiles count at 2x (double buffering); f32 temporaries count once.
    """
    per_row = 2 * bytes_per_row_2buf + bytes_per_row_1buf
    avail = max(budget - resident_bytes, align * per_row)
    tm = min(n_rows, max_rows, avail // max(per_row, 1))
    if tm >= n_rows:
        return n_rows                       # full extent is always a legal block
    return max(align, (int(tm) // align) * align)


def _stage2_tiles(n, f_pad, cb, ob, budget):
    """Pick (row_tile, col_tile, col_tiled?) for the attention kernel."""
    tm = n if n <= 256 else 256             # 256 rows fills the MXU row dim
    # Per-row-tile fixed footprint: wh1 + out (double-buffered), f32 scratch.
    fixed = 2 * (tm * 4 + tm * f_pad * ob) + tm * f_pad * 4 + 2 * tm * 4
    # Per-column cost: streamed bias / Wh / wh2 tiles (double-buffered) plus
    # the f32 (tm, tk) elementwise temporaries, counted once.
    per_col = 2 * (tm * cb + f_pad * cb + 4) + 3 * tm * 4
    avail = max(budget - fixed, 128 * per_col)
    tk = min(n, avail // max(per_col, 1))
    if tk >= n:
        return tm, n, False                 # single column step (Wh "resident")
    return tm, max(128, (int(tk) // 128) * 128), True


# ----------------------------- stage 1 kernel --------------------------------
def _wh_kernel(h_ref, w_ref, a12_ref, wh_ref, wh12_ref):
    # h / W are pre-cast to the compute dtype in the wrapper (no per-step casts).
    wh = jnp.dot(h_ref[...], w_ref[...], preferred_element_type=jnp.float32)
    wh_ref[...] = wh.astype(wh_ref.dtype)
    # Fused attention projections [Wh@a1 | Wh@a2] -> (TM, 2), kept in f32 so the
    # attention logits stay full precision.
    wh12_ref[...] = jnp.dot(wh, a12_ref[...], preferred_element_type=jnp.float32)


# ----------------------------- stage 2 kernel --------------------------------
def _attn_kernel(wh1_ref, wh2_ref, wh_ref, bias_ref, out_ref,
                 m_sc, l_sc, acc_sc, *, alpha, concat, exp_dtype):
    """Online-softmax attention: grid = (row tiles, column tiles)."""
    kv = pl.program_id(1)

    @pl.when(kv == 0)
    def _():
        m_sc[...] = jnp.full_like(m_sc, -jnp.inf)
        l_sc[...] = jnp.zeros_like(l_sc)
        acc_sc[...] = jnp.zeros_like(acc_sc)

    # Attention logits in f32 (elementwise chain kept f32 for v5e VPU).
    e = wh1_ref[...] + wh2_ref[...]                 # (TM,1)+(1,TK) -> (TM,TK)
    e = jnp.where(e > 0.0, e, alpha * e)            # LeakyReLU(alpha)
    # Fused bias = cc + (adj>0 ? 0 : MASK): one streamed operand replaces the
    # separate adj mask and cc streams.
    e = e + bias_ref[...].astype(jnp.float32)

    m_prev = m_sc[...]
    m_new = jnp.maximum(m_prev, jnp.max(e, axis=1, keepdims=True))
    rescale = jnp.exp(m_prev - m_new)               # (TM,1), 0 on the first step
    p = jnp.exp((e - m_new).astype(exp_dtype))      # bf16 EUP on v6e/v7x
    l_sc[...] = rescale * l_sc[...] + jnp.sum(p.astype(jnp.float32),
                                              axis=1, keepdims=True)
    wh = wh_ref[...]                                # (TK, F_pad), compute dtype
    acc_sc[...] = rescale * acc_sc[...] + jnp.dot(
        p.astype(wh.dtype), wh, preferred_element_type=jnp.float32)
    m_sc[...] = m_new

    @pl.when(kv == pl.num_programs(1) - 1)
    def _():
        # TODO(synk): training-mode dropout of the attention matrix goes here.
        h_prime = acc_sc[...] * pl.reciprocal(l_sc[...], approx=True)
        if concat:
            # ELU without exp() on the positive branch.
            h_prime = jnp.where(h_prime > 0.0, h_prime,
                                jnp.exp(jnp.minimum(h_prime, 0.0)) - 1.0)
        out_ref[...] = h_prime.astype(out_ref.dtype)


# ------------------------------- wrapper --------------------------------------
def gat_layer(h, W, a, adj, cc, *, alpha=0.2, concat=True,
              compute_dtype=jnp.bfloat16, _col_tile=None):
    """GAT forward.  h:(N,F_in)  W:(F_in,F_out)  a:(2*F_out,1)  adj,cc:(N,N).

    `compute_dtype` is the MXU-operand / streaming / output dtype (bf16
    recommended on v6e/v7x); attention logits and softmax stats stay in f32.
    `_col_tile` (multiple of 128) forces the column-tiled online-softmax path
    (used for testing; normally chosen automatically from the VMEM budget).
    """
    N, F_in = h.shape
    F_out = W.shape[1]
    assert a.shape == (2 * F_out, 1)
    f32 = jnp.float32
    cdt = jnp.dtype(compute_dtype)
    cb = cdt.itemsize
    ob = cb                                  # stage-2 output dtype = compute dtype

    vmem_cap = _vmem_capacity_bytes()
    vmem_limit = int(vmem_cap * 0.8)
    tile_budget = int(vmem_cap * 0.5)

    # Lane-dense padding of the output feature dim (multiple of 128 lanes).
    F_pad = _round_up(F_out, 128)
    h_c = h.astype(compute_dtype)            # pre-cast MXU operands once
    W_c = W.astype(compute_dtype)
    a12 = jnp.concatenate([a[:F_out, :], a[F_out:, :]], axis=1).astype(f32)
    if F_pad != F_out:
        W_c = jnp.pad(W_c, ((0, 0), (0, F_pad - F_out)))
        a12 = jnp.pad(a12, ((0, F_pad - F_out), (0, 0)))          # (F_pad, 2)

    # Fused additive bias (adjacency mask + cc).  Semantic note: masked logits
    # become MASK + leakyrelu(e) + cc instead of exactly MASK; after the row-max
    # subtraction and exp the difference is not observable.
    bias = (cc.astype(f32)
            + jnp.where(adj > 0, 0.0, _MASK_VALUE)).astype(compute_dtype)

    # ============ stage 1: Wh = h @ W ,  wh12 = Wh @ [a1 | a2] ===============
    tm1 = _row_tile(N,
                    bytes_per_row_2buf=F_in * cb + F_pad * cb + 8,
                    bytes_per_row_1buf=F_pad * 4,
                    resident_bytes=2 * (F_in * F_pad * cb + F_pad * 2 * 4),
                    budget=tile_budget, max_rows=512, align=32)
    cost1 = pl.CostEstimate(
        flops=int(2 * N * F_in * F_pad + 4 * N * F_pad),
        transcendentals=0,
        bytes_accessed=int(N * F_in * cb + F_in * F_pad * cb + F_pad * 8
                           + N * F_pad * cb + N * 8))
    wh_full, wh12 = pl.pallas_call(
        _wh_kernel,
        out_shape=(jax.ShapeDtypeStruct((N, F_pad), compute_dtype),
                   jax.ShapeDtypeStruct((N, 2), f32)),
        grid=(pl.cdiv(N, tm1),),
        in_specs=[pl.BlockSpec((tm1, F_in), lambda i: (i, 0)),
                  pl.BlockSpec((F_in, F_pad), lambda i: (0, 0)),   # small resident
                  pl.BlockSpec((F_pad, 2), lambda i: (0, 0))],     # small resident
        out_specs=(pl.BlockSpec((tm1, F_pad), lambda i: (i, 0)),
                   pl.BlockSpec((tm1, 2), lambda i: (i, 0))),
        compiler_params=pltpu.CompilerParams(
            dimension_semantics=("parallel",),
            vmem_limit_bytes=vmem_limit),
        cost_estimate=cost1,
    )(h_c, W_c, a12)

    # Layout plumbing (wrapper-side, cheap): per-row bias and lane-dense per-col
    # row so the kernel's broadcast add is a plain (TM,1)+(1,TK).
    wh1 = wh12[:, 0:1]                        # (N, 1) f32
    wh2_row = jnp.transpose(wh12[:, 1:2])     # (1, N) f32

    # ====== stage 2: mask + online softmax + att @ Wh (row x col tiled) ======
    tm2, tk, col_tiled = _stage2_tiles(N, F_pad, cb, ob, tile_budget)
    if _col_tile is not None:
        if _col_tile >= N:
            tk, col_tiled = N, False
        else:
            assert _col_tile % 128 == 0, "_col_tile must be a multiple of 128"
            tk, col_tiled = int(_col_tile), True

    if col_tiled:
        # Pad the column (neighbor) axis so every column tile is full; padded
        # columns carry MASK in `bias` so they contribute ~0 after softmax.
        Nc = _round_up(N, tk)
        if Nc != N:
            bias = jnp.pad(bias, ((0, 0), (0, Nc - N)),
                           constant_values=_MASK_VALUE)
            wh2_row = jnp.pad(wh2_row, ((0, 0), (0, Nc - N)))
            wh_cols = jnp.pad(wh_full, ((0, Nc - N), (0, 0)))
        else:
            wh_cols = wh_full
    else:
        Nc, wh_cols = N, wh_full

    exp_dtype = jnp.bfloat16 if (cb < 4 and _has_bf16_eup()) else f32
    cost2 = pl.CostEstimate(
        flops=int(2 * N * Nc * F_pad + 10 * N * Nc),
        transcendentals=int(N * Nc + 2 * N),
        bytes_accessed=int(N * Nc * cb + Nc * F_pad * cb + N * F_pad * ob
                           + Nc * 4 + N * 4))
    out_p = pl.pallas_call(
        functools.partial(_attn_kernel, alpha=float(alpha), concat=bool(concat),
                          exp_dtype=exp_dtype),
        out_shape=jax.ShapeDtypeStruct((N, F_pad), compute_dtype),
        grid=(pl.cdiv(N, tm2), Nc // tk),
        in_specs=[pl.BlockSpec((tm2, 1), lambda i, k: (i, 0)),
                  pl.BlockSpec((1, tk), lambda i, k: (0, k)),
                  pl.BlockSpec((tk, F_pad), lambda i, k: (k, 0)),
                  pl.BlockSpec((tm2, tk), lambda i, k: (i, k))],
        out_specs=pl.BlockSpec((tm2, F_pad), lambda i, k: (i, 0)),
        scratch_shapes=[pltpu.VMEM((tm2, 1), f32),        # running max
                        pltpu.VMEM((tm2, 1), f32),        # running sum
                        pltpu.VMEM((tm2, F_pad), f32)],   # accumulator
        compiler_params=pltpu.CompilerParams(
            dimension_semantics=("parallel", "arbitrary"),
            vmem_limit_bytes=vmem_limit),
        cost_estimate=cost2,
    )(wh1, wh2_row, wh_cols, bias)

    return out_p[:, :F_out] if F_pad != F_out else out_p


# ------------------------------ reference / test -------------------------------
def _xavier_uniform(key, shape, gain):
    fan_in, fan_out = shape
    bound = gain * jnp.sqrt(6.0 / (fan_in + fan_out))
    return jax.random.uniform(key, shape, jnp.float32, -bound, bound)


def _reference(h, W, a, adj, cc, alpha, concat=True):
    F_out = W.shape[1]
    Wh = h @ W
    e = Wh @ a[:F_out, :] + (Wh @ a[F_out:, :]).T
    e = jnp.where(e > 0, e, alpha * e) + cc
    att = jnp.where(adj > 0, e, jnp.full_like(e, _MASK_VALUE))
    att = jax.nn.softmax(att, axis=1)
    hp = att @ Wh
    return jax.nn.elu(hp) if concat else hp


def _make_inputs(key, n, f_in, f_out):
    k_h, k_w, k_a, k_adj, k_cc = jax.random.split(key, 5)
    W = _xavier_uniform(k_w, (f_in, f_out), gain=1.414)
    a = _xavier_uniform(k_a, (2 * f_out, 1), gain=1.414)
    h = jax.random.normal(k_h, (n, f_in), jnp.float32)
    adj = (jax.random.uniform(k_adj, (n, n)) > 0.5).astype(jnp.float32)
    adj = jnp.maximum(adj, jnp.eye(n, dtype=jnp.float32))   # self-loops
    cc = 0.1 * jax.random.normal(k_cc, (n, n), jnp.float32)
    return h, W, a, adj, cc


if __name__ == "__main__":
    ALPHA = 0.2  # dropout=0.6 in the module is eval-mode identity here

    # ---- small case, f32 path (only approximation: EUP reciprocal) ----------
    N, F_IN, F_OUT = 8, 32, 16
    h, W, a, adj, cc = _make_inputs(jax.random.PRNGKey(0), N, F_IN, F_OUT)
    ref_c = _reference(h, W, a, adj, cc, ALPHA, concat=True)
    ref_n = _reference(h, W, a, adj, cc, ALPHA, concat=False)

    out_c = jax.block_until_ready(
        gat_layer(h, W, a, adj, cc, alpha=ALPHA, concat=True,
                  compute_dtype=jnp.float32))
    out_n = jax.block_until_ready(
        gat_layer(h, W, a, adj, cc, alpha=ALPHA, concat=False,
                  compute_dtype=jnp.float32))
    assert out_c.shape == (N, F_OUT) and out_n.shape == (N, F_OUT)
    assert jnp.allclose(out_c, ref_c, atol=1e-2, rtol=1e-2)
    assert jnp.allclose(out_n, ref_n, atol=1e-2, rtol=1e-2)

    # ---- bf16 fast path (bf16 MXU / streams / output) ------------------------
    out_b = jax.block_until_ready(
        gat_layer(h, W, a, adj, cc, alpha=ALPHA, concat=True,
                  compute_dtype=jnp.bfloat16))
    assert out_b.shape == (N, F_OUT)
    assert jnp.allclose(out_b.astype(jnp.float32), ref_c, atol=0.15, rtol=0.15)

    # ---- column-tiled online-softmax path (large-N / v7x fallback), forced
    #      at a small size so the code path (incl. column padding) is tested ---
    N2 = 200
    h2, W2, a2, adj2, cc2 = _make_inputs(jax.random.PRNGKey(1), N2, F_IN, F_OUT)
    ref_t = _reference(h2, W2, a2, adj2, cc2, ALPHA, concat=True)
    out_t = jax.block_until_ready(
        gat_layer(h2, W2, a2, adj2, cc2, alpha=ALPHA, concat=True,
                  compute_dtype=jnp.float32, _col_tile=128))
    assert out_t.shape == (N2, F_OUT)
    assert jnp.allclose(out_t, ref_t, atol=1e-2, rtol=1e-2)

    print("KERNEL_OK")
</pallas_src>

<mosaic_0001>
module attributes {stable_mosaic.version = 11 : i64} {
  func.func @_wh_kernel(%arg0: i32, %arg1: memref<8x32xf32, #tpu.memory_space<vmem>>, %arg2: memref<32x128xf32, #tpu.memory_space<vmem>>, %arg3: memref<128x2xf32, #tpu.memory_space<vmem>>, %arg4: memref<8x128xf32, #tpu.memory_space<vmem>>, %arg5: memref<8x2xf32, #tpu.memory_space<vmem>>) attributes {dimension_semantics = [#tpu.dimension_semantics<parallel>], iteration_bounds = array<i64: 1>, scalar_prefetch = 0 : i64, scratch_operands = 0 : i64, tpu.core_type = #tpu.core_type<tc>, window_params = [{transform_indices = @transform_0, window_bounds = array<i64: 8, 32>}, {pipeline_mode = #tpu.pipeline_mode<synchronous>, transform_indices = @transform_1, window_bounds = array<i64: 32, 128>}, {pipeline_mode = #tpu.pipeline_mode<synchronous>, transform_indices = @transform_2, window_bounds = array<i64: 128, 2>}, {transform_indices = @transform_3, window_bounds = array<i64: 8, 128>}, {transform_indices = @transform_4, window_bounds = array<i64: 8, 2>}]} {
    %c0 = arith.constant 0 : index
    %c0_0 = arith.constant 0 : index
    %0 = vector.load %arg1[%c0, %c0_0] : memref<8x32xf32, #tpu.memory_space<vmem>>, vector<8x32xf32>
    %c0_1 = arith.constant 0 : index
    %c0_2 = arith.constant 0 : index
    %1 = vector.load %arg2[%c0_1, %c0_2] : memref<32x128xf32, #tpu.memory_space<vmem>>, vector<32x128xf32>
    %cst = arith.constant dense<0.000000e+00> : vector<8x128xf32>
    %2 = tpu.matmul %0, %1, %cst {dimension_numbers = #tpu.dot_dimension_numbers<[1], [0], [0], [1], [0, 0, 1, 1], [], []>} : vector<8x32xf32>, vector<32x128xf32>, vector<8x128xf32> -> vector<8x128xf32>
    %c0_3 = arith.constant 0 : index
    %c0_4 = arith.constant 0 : index
    %3 = vector.load %arg4[%c0_3, %c0_4] : memref<8x128xf32, #tpu.memory_space<vmem>>, vector<8x128xf32>
    tpu.vector_store %arg4[%c0_3, %c0_4], %2 {strides = array<i32>} : memref<8x128xf32, #tpu.memory_space<vmem>>, vector<8x128xf32>,
    %c0_5 = arith.constant 0 : index
    %c0_6 = arith.constant 0 : index
    %4 = vector.load %arg3[%c0_5, %c0_6] : memref<128x2xf32, #tpu.memory_space<vmem>>, vector<128x2xf32>
    %cst_7 = arith.constant dense<0.000000e+00> : vector<8x2xf32>
    %5 = tpu.matmul %2, %4, %cst_7 {dimension_numbers = #tpu.dot_dimension_numbers<[1], [0], [0], [1], [0, 0, 1, 1], [], []>} : vector<8x128xf32>, vector<128x2xf32>, vector<8x2xf32> -> vector<8x2xf32>
    %c0_8 = arith.constant 0 : index
    %c0_9 = arith.constant 0 : index
    %6 = vector.load %arg5[%c0_8, %c0_9] : memref<8x2xf32, #tpu.memory_space<vmem>>, vector<8x2xf32>
    tpu.vector_store %arg5[%c0_8, %c0_9], %5 {strides = array<i32>} : memref<8x2xf32, #tpu.memory_space<vmem>>, vector<8x2xf32>,
    return
  }
  func.func @transform_0(%arg0: i32) -> (i32, i32) {
    %c0_i32 = arith.constant 0 : i32
    %c0_i32_0 = arith.constant 0 : i32
    return %arg0, %c0_i32 : i32, i32
  }
  func.func @transform_1(%arg0: i32) -> (i32, i32) {
    %c0_i32 = arith.constant 0 : i32
    %c0_i32_0 = arith.constant 0 : i32
    %c0_i32_1 = arith.constant 0 : i32
    return %c0_i32, %c0_i32_0 : i32, i32
  }
  func.func @transform_2(%arg0: i32) -> (i32, i32) {
    %c0_i32 = arith.constant 0 : i32
    %c0_i32_0 = arith.constant 0 : i32
    %c0_i32_1 = arith.constant 0 : i32
    return %c0_i32, %c0_i32_0 : i32, i32
  }
  func.func @transform_3(%arg0: i32) -> (i32, i32) {
    %c0_i32 = arith.constant 0 : i32
    %c0_i32_0 = arith.constant 0 : i32
    return %arg0, %c0_i32 : i32, i32
  }
  func.func @transform_4(%arg0: i32) -> (i32, i32) {
    %c0_i32 = arith.constant 0 : i32
    %c0_i32_0 = arith.constant 0 : i32
    return %arg0, %c0_i32 : i32, i32
  }
}

</mosaic_0001>

<llo_original>
// kernel: tpu_custom_call.1
$region0: #{tpu_custom_call.1}
  #allocation0 [shape = 'u32[]', space=smem, size = 0x4, offset = 0x4, fixed_abs, tag = 'smem constant byte address 0x4 - core index']
  #allocation1 [shape = 'u32[144,128]{1,0:T(1,128)}', space=vmem, size = 0x12000, scoped, tag = 'internal scratch']
  %s0 = inlined_call_operand.vmem [shape: f32[8,32], index: 0, kind: input, shape index: {}]
  %s1 = inlined_call_operand.vmem [shape: f32[32,128], index: 1, kind: input, shape index: {}]
  %s2 = inlined_call_operand.vmem [shape: f32[128,2], index: 2, kind: input, shape index: {}]
  %s3 = inlined_call_operand.hbm [shape: f32[8,128], index: 3, kind: output, shape index: {0}]
  %s4 = inlined_call_operand.vmem [shape: f32[8,2], index: 4, kind: output, shape index: {1}]
  %5 = xla_tuple %s3, %s4
  %s6 = sld [smem:[#allocation0]]
  $region30: #{tpu_custom_call.1} parent=0
    _
  %s8 = ssub.s32 1, %s6
  %s9 = scalar_select 0, %s8, %s6
  $region1: #{tpu_custom_call.1} parent=0
    #allocation2 [shape = 'u8[4096]{0}', space=vmem, size = 0x1000, scoped, tag = 'output window, operand 0, single buffered']
    #allocation3 [shape = 's32[1]{0}', space=sflag, size = 0x4, scoped, tag = 'scoped memory for tpu_custom_call.1']
    %10 = vsyncpa [#allocation3], 0
    // Predicated region
    $region2: #{tpu_custom_call.1} parent=1 // pred_check
      _
    $region3: #{tpu_custom_call.1} parent=1 // pred_check_branch
      %12 = sbr.rel (0) target = $region5
    $region4: #{tpu_custom_call.1} parent=1 // pred_region
      _
    $region5: #{tpu_custom_call.1} parent=1 // pred_fallthru
      _
    // Predicated region
    $region6: #{tpu_custom_call.1} parent=1 // pred_check
      _
    $region7: #{tpu_custom_call.1} parent=1 // pred_check_branch
      %14 = sbr.rel (0) target = $region9
    $region8: #{tpu_custom_call.1} parent=1 // pred_region
      _
    $region9: #{tpu_custom_call.1} parent=1 // pred_fallthru
      _
    // Predicated region
    $region10: #{tpu_custom_call.1} parent=1 // pred_check
      _
    $region11: #{tpu_custom_call.1} parent=1 // pred_check_branch
      %16 = sbr.rel (0) target = $region13
    $region12: #{tpu_custom_call.1} parent=1 // pred_region
      _
    $region13: #{tpu_custom_call.1} parent=1 // pred_fallthru
      _
    %v17 = vld [vmem:[%s0] sm:$0xff]
    %v18 = vld [vmem:[%s1] sm:$0xff]
    %v19 = vld [vmem:[%s1 + $0x8] sm:$0xff]
    %v20 = vld [vmem:[%s1 + $0x10] sm:$0xff]
    %v21 = vld [vmem:[%s1 + $0x18] sm:$0xff]
    %vm22 = vcmask 261120
    %v24 = vsel %vm22, %v17, 0
    %26 = vmatprep.subr.mxu0 0.0
    %27 = vmatpush1.msra.mxu0 %v18
    %28 = vmatprep.subr.mxu0 0.0
    %29 = vmatpush1.msra.mxu0 %v19
    %30 = vmatprep.subr.mxu0 0.0
    %31 = vmatpush1.msra.mxu0 %v20
    %32 = vmatprep.subr.mxu0 0.0
    %33 = vmatpush1.msra.mxu0 %v21
    %34 = vmatprep.subr.mxu0 0.0
    %35 = vmatpush1.msra.mxu0 0.0
    %36 = vmatprep.subr.mxu0 0.0
    %37 = vmatpush1.msra.mxu0 0.0
    %38 = vmatprep.subr.mxu0 0.0
    %39 = vmatpush1.msra.mxu0 0.0
    %40 = vmatprep.subr.mxu0 0.0
    %41 = vmatpush1.msra.mxu0 0.0
    %42 = vmatprep.subr.mxu0 0.0
    %43 = vmatpush1.msra.mxu0 0.0
    %44 = vmatprep.subr.mxu0 0.0
    %45 = vmatpush1.msra.mxu0 0.0
    %46 = vmatprep.subr.mxu0 0.0
    %47 = vmatpush1.msra.mxu0 0.0
    %48 = vmatprep.subr.mxu0 0.0
    %49 = vmatpush1.msra.mxu0 0.0
    %50 = vmatprep.subr.mxu0 0.0
    %51 = vmatpush1.msra.mxu0 0.0
    %52 = vmatprep.subr.mxu0 0.0
    %53 = vmatpush1.msra.mxu0 0.0
    %54 = vmatprep.subr.mxu0 0.0
    %55 = vmatpush1.msra.mxu0 0.0
    %56 = vmatprep.subr.mxu0 0.0
    %57 = vmatpush1.msra.mxu0 0.0
    %58 = vmatprep.subr.mxu0 0.0
    %59 = vmatpush1.msra.mxu0 0.0
    %60 = vmatprep.subr.mxu0 0.0
    %61 = vmatpush1.msra.mxu0 0.0
    %62 = vmatprep.subr.mxu0 0.0
    %63 = vmatpush1.msra.mxu0 0.0
    %64 = vmatprep.subr.mxu0 0.0
    %65 = vmatpush1.msra.mxu0 0.0
    %66 = vmatprep.subr.mxu0 0.0
    %67 = vmatpush1.msra.mxu0 0.0
    %68 = vmatprep.subr.mxu0 0.0
    %69 = vmatpush1.msra.mxu0 0.0
    %70 = vmatprep.subr.mxu0 0.0
    %71 = vmatpush1.msra.mxu0 0.0
    %72 = vmatprep.subr.mxu0 0.0
    %73 = vmatpush1.msra.mxu0 0.0
    %74 = vmatprep.subr.mxu0 0.0
    %75 = vmatpush1.msra.mxu0 0.0
    %76 = vmatprep.subr.mxu0 0.0
    %77 = vmatpush1.msra.mxu0 0.0
    %78 = vmatprep.subr.mxu0 0.0
    %79 = vmatpush1.msra.mxu0 0.0
    %80 = vmatprep.subr.mxu0 0.0
    %81 = vmatpush1.msra.mxu0 0.0
    %82 = vmatprep.subr.mxu0 0.0
    %83 = vmatpush1.msra.mxu0 0.0
    %84 = vmatprep.subr.mxu0 0.0
    %85 = vmatpush1.msra.mxu0 0.0
    %86 = vmatprep.subr.mxu0 0.0
    %87 = vmatpush1.msra.mxu0 0.0
    %88 = vmatprep.subr.mxu0 0.0
    %89 = vmatpush1.msra.mxu0 0.0
    %90 = vmatprep.mubr.f32.mxu0 0.0
    %91 = vmatmul.mubr.f32.gmra.mrb[0].mxu0 %v24
    %v92 = vpop.f32.mrb[0].mxu0
    %v93 = vadd.f32 0.0, %v92
    %v94 = vpop.f32.mrb[0].mxu0
    %95 = vdwg.mxu0
    %96 = vst [vmem:[#allocation2] sm:$0xff] %v93
    %v97 = vld [vmem:[%s2] sm:$0xff]
    %v98 = vld [vmem:[%s2 + $0x8] sm:$0xff]
    %v99 = vld [vmem:[%s2 + $0x10] sm:$0xff]
    %v100 = vld [vmem:[%s2 + $0x18] sm:$0xff]
    %v101 = vld [vmem:[%s2 + $0x20] sm:$0xff]
    %v102 = vld [vmem:[%s2 + $0x28] sm:$0xff]
    %v103 = vld [vmem:[%s2 + $0x30] sm:$0xff]
    %v104 = vld [vmem:[%s2 + $0x38] sm:$0xff]
    %v105 = vld [vmem:[%s2 + $0x40] sm:$0xff]
    %v106 = vld [vmem:[%s2 + $0x48] sm:$0xff]
    %v107 = vld [vmem:[%s2 + $0x50] sm:$0xff]
    %v108 = vld [vmem:[%s2 + $0x58] sm:$0xff]
    %v109 = vld [vmem:[%s2 + $0x60] sm:$0xff]
    %v110 = vld [vmem:[%s2 + $0x68] sm:$0xff]
    %v111 = vld [vmem:[%s2 + $0x70] sm:$0xff]
    %v112 = vld [vmem:[%s2 + $0x78] sm:$0xff]
    %113 = vmatprep.subr.mxu0 0.0
    %114 = vmatpush1.msra.mxu0 %v97
    %115 = vmatprep.subr.mxu0 0.0
    %116 = vmatpush1.msra.mxu0 %v98
    %117 = vmatprep.subr.mxu0 0.0
    %118 = vmatpush1.msra.mxu0 %v99
    %119 = vmatprep.subr.mxu0 0.0
    %120 = vmatpush1.msra.mxu0 %v100
    %121 = vmatprep.subr.mxu0 0.0
    %122 = vmatpush1.msra.mxu0 %v101
    %123 = vmatprep.subr.mxu0 0.0
    %124 = vmatpush1.msra.mxu0 %v102
    %125 = vmatprep.subr.mxu0 0.0
    %126 = vmatpush1.msra.mxu0 %v103
    %127 = vmatprep.subr.mxu0 0.0
    %128 = vmatpush1.msra.mxu0 %v104
    %129 = vmatprep.subr.mxu0 0.0
    %130 = vmatpush1.msra.mxu0 %v105
    %131 = vmatprep.subr.mxu0 0.0
    %132 = vmatpush1.msra.mxu0 %v106
    %133 = vmatprep.subr.mxu0 0.0
    %134 = vmatpush1.msra.mxu0 %v107
    %135 = vmatprep.subr.mxu0 0.0
    %136 = vmatpush1.msra.mxu0 %v108
    %137 = vmatprep.subr.mxu0 0.0
    %138 = vmatpush1.msra.mxu0 %v109
    %139 = vmatprep.subr.mxu0 0.0
    %140 = vmatpush1.msra.mxu0 %v110
    %141 = vmatprep.subr.mxu0 0.0
    %142 = vmatpush1.msra.mxu0 %v111
    %143 = vmatprep.subr.mxu0 0.0
    %144 = vmatpush1.msra.mxu0 %v112
    %145 = vmatprep.subr.mxu0 0.0
    %146 = vmatpush1.msra.mxu0 0.0
    %147 = vmatprep.subr.mxu0 0.0
    %148 = vmatpush1.msra.mxu0 0.0
    %149 = vmatprep.subr.mxu0 0.0
    %150 = vmatpush1.msra.mxu0 0.0
    %151 = vmatprep.subr.mxu0 0.0
    %152 = vmatpush1.msra.mxu0 0.0
    %153 = vmatprep.subr.mxu0 0.0
    %154 = vmatpush1.msra.mxu0 0.0
    %155 = vmatprep.subr.mxu0 0.0
    %156 = vmatpush1.msra.mxu0 0.0
    %157 = vmatprep.subr.mxu0 0.0
    %158 = vmatpush1.msra.mxu0 0.0
    %159 = vmatprep.subr.mxu0 0.0
    %160 = vmatpush1.msra.mxu0 0.0
    %161 = vmatprep.subr.mxu0 0.0
    %162 = vmatpush1.msra.mxu0 0.0
    %163 = vmatprep.subr.mxu0 0.0
    %164 = vmatpush1.msra.mxu0 0.0
    %165 = vmatprep.subr.mxu0 0.0
    %166 = vmatpush1.msra.mxu0 0.0
    %167 = vmatprep.subr.mxu0 0.0
    %168 = vmatpush1.msra.mxu0 0.0
    %169 = vmatprep.subr.mxu0 0.0
    %170 = vmatpush1.msra.mxu0 0.0
    %171 = vmatprep.subr.mxu0 0.0
    %172 = vmatpush1.msra.mxu0 0.0
    %173 = vmatprep.subr.mxu0 0.0
    %174 = vmatpush1.msra.mxu0 0.0
    %175 = vmatprep.subr.mxu0 0.0
    %176 = vmatpush1.msra.mxu0 0.0
    %177 = vmatprep.mubr.f32.mxu0 0.0
    %178 = vmatmul.mubr.f32.gmra.mrb[0].mxu0 %v93
    %v179 = vpop.f32.mrb[0].mxu0
    %v180 = vadd.f32 0.0, %v179
    %v181 = vpop.f32.mrb[0].mxu0
    %182 = vdwg.mxu0
    %vm183 = vcmask 15360
    %184 = vst.msk [vmem:[%s4] sm:$0xff] %vm183, %v180
    // Predicated region
    $region14: #{tpu_custom_call.1} parent=1 // pred_check
      _
    $region15: #{tpu_custom_call.1} parent=1 // pred_check_branch
      %186 = sbr.rel (0) target = $region17
    $region16: #{tpu_custom_call.1} parent=1 // pred_region
      %s188 = ssub.s32 128, 128
      %189 = vsyncadd [#allocation3], %s188
      %s191 = sshll.u32 [#allocation2], 4
      %s192 = int_to_ptr.vmem [resolvable:$true] %s191
      %194 = dma.vmem_to_hbm [thread:$0]  %s192, 128, %s3, [#allocation3]
    $region17: #{tpu_custom_call.1} parent=1 // pred_fallthru
      _
    // Predicated region
    $region18: #{tpu_custom_call.1} parent=1 // pred_check
      _
    $region19: #{tpu_custom_call.1} parent=1 // pred_check_branch
      %196 = sbr.rel (0) target = $region21
    $region20: #{tpu_custom_call.1} parent=1 // pred_region
      _
    $region21: #{tpu_custom_call.1} parent=1 // pred_fallthru
      _
    // Predicated region
    $region22: #{tpu_custom_call.1} parent=1 // pred_check
      _
    $region23: #{tpu_custom_call.1} parent=1 // pred_check_branch
      %198 = sbr.rel (0) target = $region25
    $region24: #{tpu_custom_call.1} parent=1 // pred_region
      %199 = dma.done [#allocation3], 128
    $region25: #{tpu_custom_call.1} parent=1 // pred_fallthru
      _
    // Predicated region
    $region26: #{tpu_custom_call.1} parent=1 // pred_check
      _
    $region27: #{tpu_custom_call.1} parent=1 // pred_check_branch
      %201 = sbr.rel (0) target = $region29
    $region28: #{tpu_custom_call.1} parent=1 // pred_region
      _
    $region29: #{tpu_custom_call.1} parent=1 // pred_fallthru
      _
    %202 = vsyncpa [#allocation3], 1

</llo_original>
